<compile_context>
chip_gen: v6e
topology: v6e:2x2x1
jax: 0.10.0
libtpu: 0.0.40
codegen_flags: <defaults>
</compile_context>

<pallas_src>
import functools

import jax
import jax.numpy as jnp
from jax.experimental import pallas as pl
from jax.experimental.pallas import tpu as pltpu

_NEG_BIG = -9e15
_VMEM_LIMIT = 40 * 1024 * 1024  # explicit scoped-VMEM limit (fits v7x 64 MiB)


def _pick_tile(n, cap, quantum):
    """Largest tile <= cap that divides n and is a multiple of `quantum`.
    Falls back to the full dimension (always a legal block shape)."""
    if n <= cap:
        return n
    t = (cap // quantum) * quantum
    while t >= quantum:
        if n % t == 0:
            return t
        t -= quantum
    return n


def _proj_kernel(x_ref, w_ref, wh_ref, fs_ref, fd_ref, *, kh, nk):
    # Single lane-dense bf16 MXU matmul: all heads' Wh plus folded f_src/f_dst.
    # Written as three separate outputs so the wrapper never re-slices or
    # transposes a big intermediate in HBM.
    y = jnp.dot(x_ref[...], w_ref[...], preferred_element_type=jnp.float32)
    wh_ref[...] = y[:, :kh].astype(wh_ref.dtype)          # (tq, K*Hp)  bf16
    fs_ref[...] = y[:, kh:kh + nk]                        # (tq, K)     f32
    fd_ref[...] = y[:, kh + nk:kh + 2 * nk]               # (tq, K)     f32


def _gat_attn_kernel(bias_ref, fs_ref, fdt_ref, wh_ref, out_ref,
                     m_ref, l_ref, acc_ref, *,
                     num_heads, head_dim, alpha, apply_elu, post_relu):
    """Flash-style (online-softmax) GAT attention over node tiles, heads fused.

    grid = (q_tiles, k_tiles); k_tiles is the reduction ("arbitrary") axis.
      bias_ref : (Tq, Tk)     bf16 additive mask (0 on edges, -9e15 otherwise)
      fs_ref   : (Tq, K)      a_src . Wh_i per head (query side)
      fdt_ref  : (K,  Tk)     a_dst . Wh_j per head (key side, row layout)
      wh_ref   : (Tk, K*Hp)   bf16 projected features of the key/value tile
      out_ref  : (Tq, K*Hp)   heads concatenated along lanes (single store)
    Scratch (lane-dense, f32): m (Tq,K), l (Tq,K), acc (Tq, K*Hp).
    """
    ki = pl.program_id(1)

    @pl.when(ki == 0)
    def _init():
        m_ref[...] = jnp.full_like(m_ref, -jnp.inf)
        l_ref[...] = jnp.zeros_like(l_ref)
        acc_ref[...] = jnp.zeros_like(acc_ref)

    bias = bias_ref[...].astype(jnp.float32)              # (Tq, Tk)
    wh_kv = wh_ref[...]                                   # (Tk, K*Hp) bf16

    # K <= 4: each head's (Tq,Tk) temporaries (e, p) are fully consumed
    # (row max, exp, row sum, PV dot) before the next head's are produced,
    # and p is cast to bf16 for the MXU, halving its live footprint.
    for k in range(num_heads):
        lo = k * head_dim
        hi = lo + head_dim
        f_src = fs_ref[:, k:k + 1]                        # (Tq, 1) f32
        f_dst = fdt_ref[k:k + 1, :]                       # (1, Tk) f32
        e = f_src + f_dst                                 # (Tq, Tk)
        e = jnp.maximum(e, alpha * e) + bias              # LeakyReLU + mask

        m_prev = m_ref[:, k:k + 1]                        # (Tq, 1)
        m_new = jnp.maximum(m_prev, jnp.max(e, axis=-1, keepdims=True))
        scale = jnp.exp(m_prev - m_new)
        p = jnp.exp(e - m_new)                            # (Tq, Tk) f32

        l_ref[:, k:k + 1] = (scale * l_ref[:, k:k + 1]
                             + jnp.sum(p, axis=-1, keepdims=True))
        acc_ref[:, lo:hi] = scale * acc_ref[:, lo:hi] + jnp.dot(
            p.astype(jnp.bfloat16), wh_kv[:, lo:hi],      # bf16 MXU, f32 acc
            preferred_element_type=jnp.float32)
        m_ref[:, k:k + 1] = m_new

    @pl.when(ki == pl.num_programs(1) - 1)
    def _finalize():
        inv_l = pl.reciprocal(l_ref[...], approx=True)    # (Tq, K), EUP slot
        cols = []
        for k in range(num_heads):
            lo = k * head_dim
            h = acc_ref[:, lo:lo + head_dim] * inv_l[:, k:k + 1]
            if apply_elu:
                # clamp before exp: no inf generated for large positive h
                h = jnp.where(h > 0, h, jnp.exp(jnp.minimum(h, 0.0)) - 1.0)
            if post_relu:
                h = jnp.maximum(h, 0.0)                   # fused F.relu
            cols.append(h)
        full = cols[0] if num_heads == 1 else jnp.concatenate(cols, axis=-1)
        out_ref[...] = full.astype(out_ref.dtype)         # one wide store


def gat_layer(x, bias, W, A, *, alpha, apply_elu, post_relu, out_dtype,
              tq_cap=512, tk_cap=2048):
    """Multi-head GAT layer. Returns lane-dense (N, K*H) output."""
    K, F_in, H = W.shape
    N = x.shape[0]

    # Pad tiny head dims (layer 2: C=3) for denser stores; sliced off below.
    Hp = max(H, 8)
    if Hp != H:
        W = jnp.pad(W, ((0, 0), (0, 0), (0, Hp - H)))
        A = jnp.pad(A, ((0, 0), (0, 0), (0, Hp - H)))
    KH = K * Hp

    # Fold attention vectors into the projection: per head the augmented
    # weight is [W_k | W_k @ a_src_k | W_k @ a_dst_k].  bf16 for the MXU.
    w_all = jnp.transpose(W, (1, 0, 2)).reshape(F_in, KH)        # (F, K*Hp)
    w_src = jnp.einsum("kfh,kh->fk", W, A[:, 0, :])              # (F, K)
    w_dst = jnp.einsum("kfh,kh->fk", W, A[:, 1, :])              # (F, K)
    w_aug = jnp.concatenate([w_all, w_src, w_dst],
                            axis=1).astype(jnp.bfloat16)         # (F, KH+2K)
    d_aug = KH + 2 * K

    x_b = x.astype(jnp.bfloat16)

    # Tile plan: 512x2048 bf16 bias tile = 2 MiB (x2 buffers); total budget
    # ~8 MiB, under the explicit 40 MiB scoped limit and v7x's 64 MiB.
    # Keep N//tq >= 2 at large N so the "parallel" q axis spans both v7x TCs.
    tq = _pick_tile(N, tq_cap, 8)
    tk = _pick_tile(N, tk_cap, 128)

    wh, fs, fd = pl.pallas_call(
        functools.partial(_proj_kernel, kh=KH, nk=K),
        out_shape=(jax.ShapeDtypeStruct((N, KH), jnp.bfloat16),
                   jax.ShapeDtypeStruct((N, K), jnp.float32),
                   jax.ShapeDtypeStruct((N, K), jnp.float32)),
        grid=(N // tq,),
        in_specs=[
            pl.BlockSpec((tq, F_in), lambda i: (i, 0)),
            pl.BlockSpec((F_in, d_aug), lambda i: (0, 0)),
        ],
        out_specs=(pl.BlockSpec((tq, KH), lambda i: (i, 0)),
                   pl.BlockSpec((tq, K), lambda i: (i, 0)),
                   pl.BlockSpec((tq, K), lambda i: (i, 0))),
        compiler_params=pltpu.CompilerParams(
            dimension_semantics=("parallel",),
            vmem_limit_bytes=_VMEM_LIMIT),
    )(x_b, w_aug)

    fdt = fd.T  # (K, N) key-side row layout; tiny (N*K elements)

    kernel = functools.partial(
        _gat_attn_kernel, num_heads=K, head_dim=Hp,
        alpha=alpha, apply_elu=apply_elu, post_relu=post_relu)

    out = pl.pallas_call(
        kernel,
        out_shape=jax.ShapeDtypeStruct((N, KH), out_dtype),
        grid=(N // tq, N // tk),
        in_specs=[
            pl.BlockSpec((tq, tk), lambda qi, ki: (qi, ki)),     # bias tile
            pl.BlockSpec((tq, K), lambda qi, ki: (qi, 0)),       # f_src (query)
            pl.BlockSpec((K, tk), lambda qi, ki: (0, ki)),       # f_dst (key)
            pl.BlockSpec((tk, KH), lambda qi, ki: (ki, 0)),      # Wh (key/val)
        ],
        out_specs=pl.BlockSpec((tq, KH), lambda qi, ki: (qi, 0)),
        scratch_shapes=[
            pltpu.VMEM((tq, K), jnp.float32),     # running max  m
            pltpu.VMEM((tq, K), jnp.float32),     # running sum  l
            pltpu.VMEM((tq, KH), jnp.float32),    # lane-dense accumulator
        ],
        compiler_params=pltpu.CompilerParams(
            dimension_semantics=("parallel", "arbitrary"),
            vmem_limit_bytes=_VMEM_LIMIT),
    )(bias, fs, fdt, wh)

    if Hp != H:
        out = out.reshape(N, K, Hp)[:, :, :H].reshape(N, K * H)
    return out


def gat_forward(x, adj, params, *, alpha):
    # Additive adjacency mask, computed once and reused by both layers.
    # bf16 halves the O(N^2) DMA traffic; bf16 shares f32's exponent range so
    # -9e15 survives the cast.
    bias = jnp.where(adj > 0, 0.0, _NEG_BIG).astype(jnp.bfloat16)

    # Layer 1: K heads, concat=True (ELU); F.relu fused into the finalize
    # (dropout == identity in eval mode).  Output in bf16 feeds layer 2's
    # bf16 projection directly.
    h1 = gat_layer(x, bias, params["W1"], params["A1"], alpha=alpha,
                   apply_elu=True, post_relu=True, out_dtype=jnp.bfloat16)

    # Layer 2: 1 head, concat=False (no activation); final result in f32.
    h2 = gat_layer(h1, bias, params["W2"], params["A2"], alpha=alpha,
                   apply_elu=False, post_relu=False, out_dtype=jnp.float32)
    return h2


def init_params(key, F_in, H, C, K):
    """Deterministic xavier-uniform init (gain ~ 1.414, matching pyGAT)."""
    def xavier(k, shape, fan_in, fan_out):
        gain = 1.414
        bound = gain * jnp.sqrt(6.0 / (fan_in + fan_out))
        return jax.random.uniform(k, shape, jnp.float32, -bound, bound)

    k1, k2, k3, k4 = jax.random.split(key, 4)
    return {
        "W1": xavier(k1, (K, F_in, H), F_in, H),
        "A1": xavier(k2, (K, 2, H), 2 * H, 1),
        "W2": xavier(k3, (1, K * H, C), K * H, C),
        "A2": xavier(k4, (1, 2, C), 2 * C, 1),
    }


# ------------------------- pure-JAX reference ------------------------------
def _ref_layer(x, adj, W, A, alpha, apply_elu):
    outs = []
    for k in range(W.shape[0]):
        wh = x @ W[k]
        f_src = wh @ A[k, 0]
        f_dst = wh @ A[k, 1]
        e = f_src[:, None] + f_dst[None, :]
        e = jnp.where(e > 0, e, alpha * e)
        e = jnp.where(adj > 0, e, _NEG_BIG)
        att = jax.nn.softmax(e, axis=-1)
        h = att @ wh
        if apply_elu:
            h = jnp.where(h > 0, h, jnp.exp(jnp.minimum(h, 0.0)) - 1.0)
        outs.append(h)
    return jnp.concatenate(outs, axis=-1)


def _ref_forward(x, adj, params, alpha):
    h1 = _ref_layer(x, adj, params["W1"], params["A1"], alpha, True)
    h1 = jnp.maximum(h1, 0.0)
    return _ref_layer(h1, adj, params["W2"], params["A2"], alpha, False)


if __name__ == "__main__":
    # Small, deterministic problem consistent with GAT(F, H, C, N, dropout, alpha, K)
    N, F_in, H, C, K = 16, 8, 8, 3, 4
    alpha = 0.2

    key = jax.random.PRNGKey(0)
    kx, kadj, kp = jax.random.split(key, 3)

    x = jax.random.normal(kx, (N, F_in), dtype=jnp.float32)

    # Random symmetric adjacency with self-loops (every row has >= 1 edge)
    a_rand = jax.random.uniform(kadj, (N, N))
    adj = (a_rand < 0.3).astype(jnp.float32)
    adj = jnp.maximum(adj, adj.T)
    adj = jnp.maximum(adj, jnp.eye(N, dtype=jnp.float32))

    params = init_params(kp, F_in, H, C, K)

    out = gat_forward(x, adj, params, alpha=alpha)
    out = jax.block_until_ready(out)

    assert out.shape == (N, C), out.shape
    assert jnp.all(jnp.isfinite(out))

    # Tolerance accounts for the bf16 MXU / bf16 inter-layer activation path
    # (reference is pure f32).
    ref = _ref_forward(x, adj, params, alpha)
    assert jnp.allclose(out, ref, rtol=5e-2, atol=5e-2), (out, ref)

    print("KERNEL_OK")
</pallas_src>

<mosaic_0001>
module attributes {stable_mosaic.version = 11 : i64} {
  func.func @_proj_kernel(%arg0: i32, %arg1: memref<16x8xbf16, #tpu.memory_space<vmem>>, %arg2: memref<8x40xbf16, #tpu.memory_space<vmem>>, %arg3: memref<16x32xbf16, #tpu.memory_space<vmem>>, %arg4: memref<16x4xf32, #tpu.memory_space<vmem>>, %arg5: memref<16x4xf32, #tpu.memory_space<vmem>>) attributes {dimension_semantics = [#tpu.dimension_semantics<parallel>], iteration_bounds = array<i64: 1>, scalar_prefetch = 0 : i64, scratch_operands = 0 : i64, tpu.core_type = #tpu.core_type<tc>, window_params = [{transform_indices = @transform_0, window_bounds = array<i64: 16, 8>}, {pipeline_mode = #tpu.pipeline_mode<synchronous>, transform_indices = @transform_1, window_bounds = array<i64: 8, 40>}, {transform_indices = @transform_2, window_bounds = array<i64: 16, 32>}, {transform_indices = @transform_3, window_bounds = array<i64: 16, 4>}, {transform_indices = @transform_4, window_bounds = array<i64: 16, 4>}]} {
    %c0 = arith.constant 0 : index
    %c0_0 = arith.constant 0 : index
    %0 = vector.load %arg1[%c0, %c0_0] : memref<16x8xbf16, #tpu.memory_space<vmem>>, vector<16x8xbf16>
    %c0_1 = arith.constant 0 : index
    %c0_2 = arith.constant 0 : index
    %1 = vector.load %arg2[%c0_1, %c0_2] : memref<8x40xbf16, #tpu.memory_space<vmem>>, vector<8x40xbf16>
    %cst = arith.constant dense<0.000000e+00> : vector<16x40xf32>
    %2 = tpu.matmul %0, %1, %cst {dimension_numbers = #tpu.dot_dimension_numbers<[1], [0], [0], [1], [0, 0, 1, 1], [], []>} : vector<16x8xbf16>, vector<8x40xbf16>, vector<16x40xf32> -> vector<16x40xf32>
    %3 = vector.extract_strided_slice %2 {offsets = [0, 0], sizes = [16, 32], strides = [1, 1]} : vector<16x40xf32> to vector<16x32xf32>
    %4 = arith.truncf %3 : vector<16x32xf32> to vector<16x32xbf16>
    %c0_3 = arith.constant 0 : index
    %c0_4 = arith.constant 0 : index
    %5 = vector.load %arg3[%c0_3, %c0_4] : memref<16x32xbf16, #tpu.memory_space<vmem>>, vector<16x32xbf16>
    tpu.vector_store %arg3[%c0_3, %c0_4], %4 {strides = array<i32>} : memref<16x32xbf16, #tpu.memory_space<vmem>>, vector<16x32xbf16>,
    %6 = vector.extract_strided_slice %2 {offsets = [0, 32], sizes = [16, 4], strides = [1, 1]} : vector<16x40xf32> to vector<16x4xf32>
    %c0_5 = arith.constant 0 : index
    %c0_6 = arith.constant 0 : index
    %7 = vector.load %arg4[%c0_5, %c0_6] : memref<16x4xf32, #tpu.memory_space<vmem>>, vector<16x4xf32>
    tpu.vector_store %arg4[%c0_5, %c0_6], %6 {strides = array<i32>} : memref<16x4xf32, #tpu.memory_space<vmem>>, vector<16x4xf32>,
    %8 = vector.extract_strided_slice %2 {offsets = [0, 36], sizes = [16, 4], strides = [1, 1]} : vector<16x40xf32> to vector<16x4xf32>
    %c0_7 = arith.constant 0 : index
    %c0_8 = arith.constant 0 : index
    %9 = vector.load %arg5[%c0_7, %c0_8] : memref<16x4xf32, #tpu.memory_space<vmem>>, vector<16x4xf32>
    tpu.vector_store %arg5[%c0_7, %c0_8], %8 {strides = array<i32>} : memref<16x4xf32, #tpu.memory_space<vmem>>, vector<16x4xf32>,
    return
  }
  func.func @transform_0(%arg0: i32) -> (i32, i32) {
    %c0_i32 = arith.constant 0 : i32
    %c0_i32_0 = arith.constant 0 : i32
    return %arg0, %c0_i32 : i32, i32
  }
  func.func @transform_1(%arg0: i32) -> (i32, i32) {
    %c0_i32 = arith.constant 0 : i32
    %c0_i32_0 = arith.constant 0 : i32
    %c0_i32_1 = arith.constant 0 : i32
    return %c0_i32, %c0_i32_0 : i32, i32
  }
  func.func @transform_2(%arg0: i32) -> (i32, i32) {
    %c0_i32 = arith.constant 0 : i32
    %c0_i32_0 = arith.constant 0 : i32
    return %arg0, %c0_i32 : i32, i32
  }
  func.func @transform_3(%arg0: i32) -> (i32, i32) {
    %c0_i32 = arith.constant 0 : i32
    %c0_i32_0 = arith.constant 0 : i32
    return %arg0, %c0_i32 : i32, i32
  }
  func.func @transform_4(%arg0: i32) -> (i32, i32) {
    %c0_i32 = arith.constant 0 : i32
    %c0_i32_0 = arith.constant 0 : i32
    return %arg0, %c0_i32 : i32, i32
  }
}

</mosaic_0001>

<llo_original>
// kernel: tpu_custom_call.1
$region0: #{tpu_custom_call.1}
  #allocation0 [shape = 'u32[]', space=smem, size = 0x4, offset = 0x4, fixed_abs, tag = 'smem constant byte address 0x4 - core index']
  #allocation1 [shape = 'u32[144,128]{1,0:T(1,128)}', space=vmem, size = 0x12000, scoped, tag = 'internal scratch']
  %s0 = inlined_call_operand.vmem [shape: bf16[16,8], index: 0, kind: input, shape index: {}]
  %s1 = inlined_call_operand.vmem [shape: bf16[8,40], index: 1, kind: input, shape index: {}]
  %s2 = inlined_call_operand.hbm [shape: bf16[16,32], index: 2, kind: output, shape index: {0}]
  %s3 = inlined_call_operand.vmem [shape: f32[16,4], index: 3, kind: output, shape index: {1}]
  %s4 = inlined_call_operand.vmem [shape: f32[16,4], index: 4, kind: output, shape index: {2}]
  %5 = xla_tuple %s2, %s3, %s4
  %s6 = sld [smem:[#allocation0]]
  $region34: #{tpu_custom_call.1} parent=0
    _
  %s8 = ssub.s32 1, %s6
  %s9 = scalar_select 0, %s8, %s6
  $region1: #{tpu_custom_call.1} parent=0
    #allocation2 [shape = 'u8[4096]{0}', space=vmem, size = 0x1000, scoped, tag = 'output window, operand 0, single buffered']
    #allocation3 [shape = 's32[1]{0}', space=sflag, size = 0x4, scoped, tag = 'scoped memory for tpu_custom_call.1']
    %10 = vsyncpa [#allocation3], 0
    // Predicated region
    $region2: #{tpu_custom_call.1} parent=1 // pred_check
      _
    $region3: #{tpu_custom_call.1} parent=1 // pred_check_branch
      %12 = sbr.rel (0) target = $region5
    $region4: #{tpu_custom_call.1} parent=1 // pred_region
      _
    $region5: #{tpu_custom_call.1} parent=1 // pred_fallthru
      _
    // Predicated region
    $region6: #{tpu_custom_call.1} parent=1 // pred_check
      _
    $region7: #{tpu_custom_call.1} parent=1 // pred_check_branch
      %14 = sbr.rel (0) target = $region9
    $region8: #{tpu_custom_call.1} parent=1 // pred_region
      _
    $region9: #{tpu_custom_call.1} parent=1 // pred_fallthru
      _
    %v16 = vld [vmem:[%s0] sm:$0xf]
    %v17 = vld [vmem:[%s0 + $0x4] sm:$0xf]
    %v18 = vld [vmem:[%s1] sm:$0xf]
    %v21 = vunpack.c.l.b16 %v16
    %v22 = vunpack.c.l.b16 %v17
    %v23 = vpack.c.b16 %v22, %v21
    %vm24 = vcmask 64512
    %v26 = vsel %vm24, %v23, 0
    %vm28 = vcmask 1043456
    %v30 = vsel %vm28, %v18, 0
    %32 = vmatprep.subr.bf16.mxu0 0
    %33 = vmatpush1.bf16.msra.mxu0 0
    %34 = vmatprep.subr.bf16.mxu0 0
    %35 = vmatpush1.bf16.msra.mxu0 0
    %36 = vmatprep.subr.bf16.mxu0 0
    %37 = vmatpush1.bf16.msra.mxu0 0
    %38 = vmatprep.subr.bf16.mxu0 0
    %39 = vmatpush1.bf16.msra.mxu0 0
    %40 = vmatprep.subr.bf16.mxu0 0
    %41 = vmatpush1.bf16.msra.mxu0 0
    %42 = vmatprep.subr.bf16.mxu0 0
    %43 = vmatpush1.bf16.msra.mxu0 0
    %44 = vmatprep.subr.bf16.mxu0 0
    %45 = vmatpush1.bf16.msra.mxu0 0
    %46 = vmatprep.subr.bf16.mxu0 0
    %47 = vmatpush1.bf16.msra.mxu0 %v30
    %48 = vmatprep.subr.bf16.mxu0 0
    %49 = vmatpush2.bf16.msra.mxu0 0
    %50 = vmatprep.subr.bf16.mxu0 0
    %51 = vmatpush2.bf16.msra.mxu0 0
    %52 = vmatprep.subr.bf16.mxu0 0
    %53 = vmatpush2.bf16.msra.mxu0 0
    %54 = vmatprep.subr.bf16.mxu0 0
    %55 = vmatpush2.bf16.msra.mxu0 0
    %56 = vmatprep.subr.bf16.mxu0 0
    %57 = vmatpush2.bf16.msra.mxu0 0
    %58 = vmatprep.subr.bf16.mxu0 0
    %59 = vmatpush2.bf16.msra.mxu0 0
    %60 = vmatprep.subr.bf16.mxu0 0
    %61 = vmatpush2.bf16.msra.mxu0 0
    %62 = vmatprep.subr.bf16.mxu0 0
    %63 = vmatpush2.bf16.msra.mxu0 0
    %64 = vmatprep.mubr.bf16.mxu0 0
    %65 = vmatmul.mubr.bf16.gmra.mxu0 %v26
    %v66 = vpop.f32.mrf.mxu0
    %v67 = vadd.f32 0.0, %v66
    %v68 = vpop.f32.mrf.mxu0
    %v69 = vpop.f32.mrf.mxu0
    %v70 = vadd.f32 0.0, %v69
    %v71 = vpop.f32.mrf.mxu0
    %72 = vdwg.mxu0
    %v73 = vpack.c.bf16 %v70, %v67
    %v75 = vunpack.c.l.b16 %v73
    %v76 = vunpack.c.h.b16 %v73
    %v77 = vpack.c.b16 %v75, %v75
    %v78 = vpack.c.b16 %v76, %v76
    %vm81 = vcmask 257024
    %82 = vst.msk [vmem:[#allocation2] sm:$0xf] %vm81, %v77
    %83 = vst.msk [vmem:[#allocation2 + $0x4] sm:$0xf] %vm81, %v78
    %86 = vrot.lane.b32.xlu0 %v67, 96
    %v87 = vpop.permute.xlu0 %86
    %88 = vrot.lane.b32.xlu0 %v70, 96
    %v89 = vpop.permute.xlu0 %88
    %vm92 = vcmask 31744
    %93 = vst.msk [vmem:[%s3] sm:$0xff] %vm92, %v87
    %94 = vst.msk [vmem:[%s3 + $0x8] sm:$0xff] %vm92, %v89
    %95 = vrot.lane.b32.xlu0 %v67, 92
    %v96 = vpop.permute.xlu0 %95
    %97 = vrot.lane.b32.xlu0 %v70, 92
    %v98 = vpop.permute.xlu0 %97
    %101 = vst.msk [vmem:[%s4] sm:$0xff] %vm92, %v96
    %102 = vst.msk [vmem:[%s4 + $0x8] sm:$0xff] %vm92, %v98
    // Predicated region
    $region10: #{tpu_custom_call.1} parent=1 // pred_check
      _
    $region11: #{tpu_custom_call.1} parent=1 // pred_check_branch
      %104 = sbr.rel (0) target = $region13
    $region12: #{tpu_custom_call.1} parent=1 // pred_region
      %s106 = ssub.s32 128, 128
      %107 = vsyncadd [#allocation3], %s106
      %s108 = sshll.u32 [#allocation2], 4
      %s109 = int_to_ptr.vmem [resolvable:$true] %s108
      %114 = dma.vmem_to_hbm [thread:$0]  %s109, 128, %s2, [#allocation3], 64, 64, 4
    $region13: #{tpu_custom_call.1} parent=1 // pred_fallthru
      _
    // Predicated region
    $region14: #{tpu_custom_call.1} parent=1 // pred_check
      _
    $region15: #{tpu_custom_call.1} parent=1 // pred_check_branch
      %116 = sbr.rel (0) target = $region17
    $region16: #{tpu_custom_call.1} parent=1 // pred_region
      _
    $region17: #{tpu_custom_call.1} parent=1 // pred_fallthru
      _
    // Predicated region
    $region18: #{tpu_custom_call.1} parent=1 // pred_check
      _
    $region19: #{tpu_custom_call.1} parent=1 // pred_check_branch
      %118 = sbr.rel (0) target = $region21
    $region20: #{tpu_custom_call.1} parent=1 // pred_region
      _
    $region21: #{tpu_custom_call.1} parent=1 // pred_fallthru
      _
    // Predicated region
    $region22: #{tpu_custom_call.1} parent=1 // pred_check
      _
    $region23: #{tpu_custom_call.1} parent=1 // pred_check_branch
      %120 = sbr.rel (0) target = $region25
    $region24: #{tpu_custom_call.1} parent=1 // pred_region
      %121 = dma.done [#allocation3], 128
    $region25: #{tpu_custom_call.1} parent=1 // pred_fallthru
      _
    // Predicated region
    $region26: #{tpu_custom_call.1} parent=1 // pred_check
      _
    $region27: #{tpu_custom_call.1} parent=1 // pred_check_branch
      %123 = sbr.rel (0) target = $region29
    $region28: #{tpu_custom_call.1} parent=1 // pred_region
      _
    $region29: #{tpu_custom_call.1} parent=1 // pred_fallthru
      _
    // Predicated region
    $region30: #{tpu_custom_call.1} parent=1 // pred_check
      _
    $region31: #{tpu_custom_call.1} parent=1 // pred_check_branch
      %125 = sbr.rel (0) target = $region33
    $region32: #{tpu_custom_call.1} parent=1 // pred_region
      _
    $region33: #{tpu_custom_call.1} parent=1 // pred_fallthru
      _
    %126 = vsyncpa [#allocation3], 1

</llo_original>
